<compile_context>
chip_gen: v7x
topology: tpu7x:2x2x1
jax: 0.10.0
libtpu: 0.0.40
codegen_flags: <defaults>
</compile_context>

<pallas_src>
import functools

import jax
import jax.numpy as jnp
from jax import lax
from jax.experimental import pallas as pl
from jax.experimental.pallas import tpu as pltpu


# --------------------------------------------------------------------------
# Kernel
# --------------------------------------------------------------------------
def _pow_1m_p(p, alpha):
    """(1 - p) ** alpha, specialized for the common alpha values."""
    a = float(alpha)
    if a == 1.0:
        return 1.0 - p
    if a == int(a) and 0 <= int(a) <= 8:
        ia = int(a)
        if ia == 0:
            return jnp.ones_like(p)
        base = 1.0 - p
        w = base
        for _ in range(ia - 1):
            w = w * base
        return w
    return (1.0 - p) ** a          # general case: log/exp pow on the EUP


def _dice_kernel(logits_ref, targets_ref, out_ref, *, alpha, gamma, n_rows,
                 fused):
    x = logits_ref[...]                                        # (tn, C), in dtype
    tn, c = x.shape

    # Row max in the native dtype (exact, halves VPU traffic for bf16);
    # exponentials / sums in f32.
    m = jnp.max(x, axis=1, keepdims=True)                      # (tn, 1)
    e = jnp.exp(x.astype(jnp.float32) - m.astype(jnp.float32)) # (tn, C) f32
    sum_e = jnp.sum(e, axis=1, keepdims=True)                  # (tn, 1)

    # Target-class numerator selected straight out of `e` (no second exp).
    col_ids = lax.broadcasted_iota(jnp.int32, (tn, c), 1)
    one_hot = col_ids == targets_ref[...]                      # (tn, C) bool
    e_t = jnp.sum(jnp.where(one_hot, e, 0.0), axis=1, keepdims=True)

    p = e_t * pl.reciprocal(sum_e, approx=True)                # softmax[target]
    pf = _pow_1m_p(p, alpha) * p
    loss = 1.0 - (2.0 * pf + gamma) / (pf + (1.0 + gamma))     # (tn, 1) f32

    if fused:
        i = pl.program_id(0)

        @pl.when(i == 0)
        def _():
            out_ref[...] = jnp.zeros_like(out_ref)

        if n_rows % tn != 0:                                   # ragged tail
            row_ids = i * tn + lax.broadcasted_iota(jnp.int32, (tn, 1), 0)
            loss = jnp.where(row_ids < n_rows, loss, 0.0)
        out_ref[...] += jnp.sum(loss, axis=0, keepdims=True)   # (1, 1)
    else:
        out_ref[...] = loss


# --------------------------------------------------------------------------
# Tiling / VMEM budgeting
# --------------------------------------------------------------------------
def _packing_granule(dtype):
    itemsize = jnp.dtype(dtype).itemsize
    return {4: 8, 2: 16, 1: 32}.get(itemsize, 8)


def _vmem_capacity_bytes():
    try:
        return int(pltpu.get_tpu_info().vmem_capacity_bytes)
    except Exception:
        return 64 << 20            # conservative (v7x-sized) default


def _per_row_vmem_bytes(c, itemsize):
    lane_c = max(c, 128)
    # 2x double-buffered logits / targets / per-sample output blocks, plus ~4
    # tile-sized f32 temporaries (f32 cast of x, e, the where-product, iota).
    return 2 * (lane_c * itemsize + 128 * 4 + 128 * 4) + 4 * lane_c * 4


def _pick_tile_n(n, c, itemsize, granule, vmem_cap):
    """Largest batch tile (multiple of granule) whose VMEM working set fits."""
    per_row = _per_row_vmem_bytes(c, itemsize)
    budget = vmem_cap * 6 // 10
    cap_rows = (budget // per_row) // granule * granule
    if cap_rows < granule:
        return 0                   # one row does not fit -> caller falls back
    if n <= cap_rows and n % granule == 0:
        return n
    # Prefer a divisor of n (no ragged tail); bounded search.
    t = min(cap_rows, n // granule * granule)
    for _ in range(1024):
        if t < granule:
            break
        if n % t == 0:
            return t
        t -= granule
    # No divisor: ragged tail handled by cdiv grid + in-kernel masking.
    return min(cap_rows, n // granule * granule)


# --------------------------------------------------------------------------
# Reference / XLA fallback (also used for tiny C per the perf review)
# --------------------------------------------------------------------------
def _reference(logits, targets, *, alpha=1.0, gamma=1.0, reduction="mean"):
    probs = jax.nn.softmax(logits.astype(jnp.float32), axis=1)
    p = jnp.take_along_axis(probs, targets.reshape(-1, 1).astype(jnp.int32),
                            axis=1)
    pf = (1.0 - p) ** alpha * p
    loss = 1.0 - (2.0 * pf + gamma) / (pf + 1.0 + gamma)
    if reduction == "mean":
        return loss.mean()
    if reduction == "sum":
        return loss.sum()
    return loss


# --------------------------------------------------------------------------
# Public wrapper
# --------------------------------------------------------------------------
def self_adj_dice_loss(logits, targets, *, alpha=1.0, gamma=1.0,
                       reduction="mean", tile_n=None, core_parallel=False,
                       fuse_reduction=None, xla_fallback_classes=64):
    """Pallas implementation of SelfAdjDiceLoss ('mean' / 'sum' / 'none')."""
    if reduction not in ("mean", "sum", "none", None):
        raise NotImplementedError(f"Reduction `{reduction}` is not supported.")

    n, c = logits.shape
    itemsize = jnp.dtype(logits.dtype).itemsize
    granule = _packing_granule(logits.dtype)
    vmem_cap = _vmem_capacity_bytes()

    if tile_n is None:
        tile_n_ = _pick_tile_n(n, c, itemsize, granule, vmem_cap)
    else:
        tile_n_ = min(int(tile_n) // granule * granule, n // granule * granule)

    # Tiny class counts (lane utilization <= 50%) or rows that do not fit a
    # VMEM block are better served by plain XLA.
    if c <= xla_fallback_classes or n < granule or tile_n_ < granule:
        return _reference(logits, targets, alpha=alpha, gamma=gamma,
                          reduction=reduction)

    targets_2d = targets.reshape(n, 1).astype(jnp.int32)
    grid = (pl.cdiv(n, tile_n_),)

    vmem_limit = _per_row_vmem_bytes(c, itemsize) * tile_n_ + (4 << 20)
    vmem_limit = int(min(max(vmem_limit, 16 << 20), vmem_cap * 85 // 100))

    if fuse_reduction is None:
        fuse_reduction = reduction in ("mean", "sum") and not core_parallel
    fused = bool(fuse_reduction) and reduction in ("mean", "sum")

    kernel = functools.partial(_dice_kernel, alpha=alpha, gamma=gamma,
                               n_rows=n, fused=fused)

    in_specs = [
        pl.BlockSpec((tile_n_, c), lambda i: (i, 0)),
        pl.BlockSpec((tile_n_, 1), lambda i: (i, 0)),
    ]

    if fused:
        out_shape = jax.ShapeDtypeStruct((1, 1), jnp.float32)
        out_specs = pl.BlockSpec((1, 1), lambda i: (0, 0))
        dim_sem = ("arbitrary",)
    else:
        out_shape = jax.ShapeDtypeStruct((n, 1), jnp.float32)
        out_specs = pl.BlockSpec((tile_n_, 1), lambda i: (i, 0))
        dim_sem = (pltpu.CORE_PARALLEL,) if core_parallel else ("parallel",)

    out = pl.pallas_call(
        kernel,
        out_shape=out_shape,
        grid_spec=pltpu.PrefetchScalarGridSpec(
            num_scalar_prefetch=0,
            grid=grid,
            in_specs=in_specs,
            out_specs=out_specs,
        ),
        compiler_params=pltpu.CompilerParams(
            dimension_semantics=dim_sem,
            vmem_limit_bytes=vmem_limit),
    )(logits, targets_2d)

    if reduction == "mean":
        total = out[0, 0] if fused else jnp.sum(out)
        return total / n
    if reduction == "sum":
        return out[0, 0] if fused else jnp.sum(out)
    return out                     # 'none' -> (N, 1), matches PyTorch


# --------------------------------------------------------------------------
# Demo / correctness check
# --------------------------------------------------------------------------
if __name__ == "__main__":
    key = jax.random.PRNGKey(0)
    ks = jax.random.split(key, 6)

    def check(logits, targets, *, atol=1e-3, rtol=1e-3, **kw):
        out = jax.block_until_ready(self_adj_dice_loss(logits, targets, **kw))
        ref = _reference(logits, targets,
                         alpha=kw.get("alpha", 1.0),
                         gamma=kw.get("gamma", 1.0),
                         reduction=kw.get("reduction", "mean"))
        assert out.shape == ref.shape, (kw, out.shape, ref.shape)
        assert jnp.allclose(out, ref, atol=atol, rtol=rtol), (kw, out, ref)

    # Case 1: f32 logits, divisible batch — fused mean/sum + per-sample 'none'.
    n1, c1 = 64, 128
    logits1 = jax.random.normal(ks[0], (n1, c1), dtype=jnp.float32)
    targets1 = jax.random.randint(ks[1], (n1,), 0, c1, dtype=jnp.int32)
    check(logits1, targets1, reduction="mean")
    check(logits1, targets1, reduction="sum")
    check(logits1, targets1, reduction="none")
    check(logits1, targets1, reduction="mean", alpha=2.0, gamma=0.5)

    # Case 2: ragged batch (37 rows) and non-multiple-of-128 class count.
    n2, c2 = 37, 96
    logits2 = jax.random.normal(ks[2], (n2, c2), dtype=jnp.float32)
    targets2 = jax.random.randint(ks[3], (n2,), 0, c2, dtype=jnp.int32)
    check(logits2, targets2, reduction="mean")
    check(logits2, targets2, reduction="none")

    # Case 3: bf16 logits (halved HBM stream), batch packing granule of 16.
    n3, c3 = 48, 128
    logits3 = jax.random.normal(ks[4], (n3, c3),
                                dtype=jnp.float32).astype(jnp.bfloat16)
    targets3 = jax.random.randint(ks[5], (n3,), 0, c3, dtype=jnp.int32)
    check(logits3, targets3, reduction="mean", atol=2e-3, rtol=2e-3)
    check(logits3, targets3, reduction="none", atol=2e-3, rtol=2e-3)

    print("KERNEL_OK")
</pallas_src>

<mosaic_0001>
module attributes {stable_mosaic.version = 11 : i64} {
  func.func @_dice_kernel(%arg0: i32, %arg1: memref<64x128xf32, #tpu.memory_space<vmem>>, %arg2: memref<64x1xi32, #tpu.memory_space<vmem>>, %arg3: memref<1x1xf32, #tpu.memory_space<vmem>>) attributes {dimension_semantics = [#tpu.dimension_semantics<arbitrary>], iteration_bounds = array<i64: 1>, scalar_prefetch = 0 : i64, scratch_operands = 0 : i64, tpu.core_type = #tpu.core_type<tc>, window_params = [{transform_indices = @transform_0, window_bounds = array<i64: 64, 128>}, {transform_indices = @transform_1, window_bounds = array<i64: 64, 1>}, {pipeline_mode = #tpu.pipeline_mode<synchronous>, transform_indices = @transform_2, window_bounds = array<i64: 1, 1>}]} {
    %c0 = arith.constant 0 : index
    %c0_0 = arith.constant 0 : index
    %0 = vector.load %arg1[%c0, %c0_0] : memref<64x128xf32, #tpu.memory_space<vmem>>, vector<64x128xf32>
    %cst = arith.constant dense<0xFF800000> : vector<64xf32>
    %1 = vector.multi_reduction <maximumf>, %0, %cst [1] : vector<64x128xf32> to vector<64xf32>
    %2 = vector.shape_cast %1 : vector<64xf32> to vector<64x1xf32>
    %3 = vector.broadcast %2 : vector<64x1xf32> to vector<64x128xf32>
    %4 = arith.subf %0, %3 : vector<64x128xf32>
    %5 = math.exp %4 : vector<64x128xf32>
    %cst_1 = arith.constant dense<0.000000e+00> : vector<64xf32>
    %6 = vector.multi_reduction <add>, %5, %cst_1 [1] : vector<64x128xf32> to vector<64xf32>
    %7 = vector.shape_cast %6 : vector<64xf32> to vector<64x1xf32>
    %8 = tpu.iota {dimensions = array<i32: 1>} : vector<64x128xi32>
    %c0_2 = arith.constant 0 : index
    %c0_3 = arith.constant 0 : index
    %9 = vector.load %arg2[%c0_2, %c0_3] : memref<64x1xi32, #tpu.memory_space<vmem>>, vector<64x1xi32>
    %10 = vector.broadcast %9 : vector<64x1xi32> to vector<64x128xi32>
    %11 = arith.cmpi eq, %8, %10 : vector<64x128xi32>
    %cst_4 = arith.constant 0.000000e+00 : f32
    %12 = vector.broadcast %cst_4 : f32 to vector<64x128xf32>
    %13 = arith.select %11, %5, %12 : vector<64x128xi1>, vector<64x128xf32>
    %cst_5 = arith.constant dense<0.000000e+00> : vector<64xf32>
    %14 = vector.multi_reduction <add>, %13, %cst_5 [1] : vector<64x128xf32> to vector<64xf32>
    %15 = vector.shape_cast %14 : vector<64xf32> to vector<64x1xf32>
    %16 = tpu.reciprocal %7 {approx = true} : vector<64x1xf32> -> vector<64x1xf32>
    %17 = arith.mulf %15, %16 : vector<64x1xf32>
    %cst_6 = arith.constant 1.000000e+00 : f32
    %18 = vector.broadcast %cst_6 : f32 to vector<64x1xf32>
    %19 = arith.subf %18, %17 : vector<64x1xf32>
    %20 = arith.mulf %19, %17 : vector<64x1xf32>
    %cst_7 = arith.constant 2.000000e+00 : f32
    %21 = vector.broadcast %cst_7 : f32 to vector<64x1xf32>
    %22 = arith.mulf %21, %20 : vector<64x1xf32>
    %cst_8 = arith.constant 1.000000e+00 : f32
    %23 = vector.broadcast %cst_8 : f32 to vector<64x1xf32>
    %24 = arith.addf %22, %23 : vector<64x1xf32>
    %cst_9 = arith.constant 2.000000e+00 : f32
    %25 = vector.broadcast %cst_9 : f32 to vector<64x1xf32>
    %26 = arith.addf %20, %25 : vector<64x1xf32>
    %27 = arith.divf %24, %26 : vector<64x1xf32>
    %cst_10 = arith.constant 1.000000e+00 : f32
    %28 = vector.broadcast %cst_10 : f32 to vector<64x1xf32>
    %29 = arith.subf %28, %27 : vector<64x1xf32>
    %c0_i32 = arith.constant 0 : i32
    %30 = arith.cmpi eq, %arg0, %c0_i32 : i32
    %31 = arith.extui %30 : i1 to i32
    %c0_i32_11 = arith.constant 0 : i32
    %32 = arith.cmpi ne, %31, %c0_i32_11 : i32
    scf.if %32 {
      %cst_17 = arith.constant 0.000000e+00 : f32
      %38 = vector.broadcast %cst_17 : f32 to vector<1x1xf32>
      %c0_18 = arith.constant 0 : index
      %c0_19 = arith.constant 0 : index
      %39 = vector.load %arg3[%c0_18, %c0_19] : memref<1x1xf32, #tpu.memory_space<vmem>>, vector<1x1xf32>
      tpu.vector_store %arg3[%c0_18, %c0_19], %38 {strides = array<i32>} : memref<1x1xf32, #tpu.memory_space<vmem>>, vector<1x1xf32>,
    } else {
    }
    %c0_12 = arith.constant 0 : index
    %c0_13 = arith.constant 0 : index
    %33 = vector.load %arg3[%c0_12, %c0_13] : memref<1x1xf32, #tpu.memory_space<vmem>>, vector<1x1xf32>
    %cst_14 = arith.constant dense<0.000000e+00> : vector<1xf32>
    %34 = vector.multi_reduction <add>, %29, %cst_14 [0] : vector<64x1xf32> to vector<1xf32>
    %35 = vector.shape_cast %34 : vector<1xf32> to vector<1x1xf32>
    %36 = arith.addf %33, %35 : vector<1x1xf32>
    %c0_15 = arith.constant 0 : index
    %c0_16 = arith.constant 0 : index
    %37 = vector.load %arg3[%c0_15, %c0_16] : memref<1x1xf32, #tpu.memory_space<vmem>>, vector<1x1xf32>
    tpu.vector_store %arg3[%c0_15, %c0_16], %36 {strides = array<i32>} : memref<1x1xf32, #tpu.memory_space<vmem>>, vector<1x1xf32>,
    return
  }
  func.func @transform_0(%arg0: i32) -> (i32, i32) {
    %c0_i32 = arith.constant 0 : i32
    %c0_i32_0 = arith.constant 0 : i32
    return %arg0, %c0_i32 : i32, i32
  }
  func.func @transform_1(%arg0: i32) -> (i32, i32) {
    %c0_i32 = arith.constant 0 : i32
    %c0_i32_0 = arith.constant 0 : i32
    return %arg0, %c0_i32 : i32, i32
  }
  func.func @transform_2(%arg0: i32) -> (i32, i32) {
    %c0_i32 = arith.constant 0 : i32
    %c0_i32_0 = arith.constant 0 : i32
    %c0_i32_1 = arith.constant 0 : i32
    return %c0_i32, %c0_i32_0 : i32, i32
  }
}

</mosaic_0001>

<llo_original>
// kernel: tpu_custom_call.1
$region0: #{tpu_custom_call.1}
  #allocation0 [shape = 'u32[]', space=smem, size = 0x4, offset = 0x4, fixed_abs, tag = 'smem constant byte address 0x4 - core index']
  #allocation1 [shape = 'u32[144,128]{1,0:T(1,128)}', space=vmem, size = 0x12000, scoped, tag = 'internal scratch']
  %s0 = inlined_call_operand.vmem [shape: f32[64,128], index: 0, kind: input, shape index: {}]
  %s1 = inlined_call_operand.vmem [shape: s32[64,1], index: 1, kind: input, shape index: {}]
  %s2 = inlined_call_operand.hbm [shape: f32[1,1], index: 2, kind: output, shape index: {}]
  %s3 = sld [smem:[#allocation0]]
  $region22: #{tpu_custom_call.1} parent=0
    _
  %s5 = ssub.s32 1, %s3
  %s6 = scalar_select 0, %s5, %s3
  $region1: #{tpu_custom_call.1} parent=0
    #allocation2 [shape = 'u8[512]{0}', space=vmem, size = 0x400, scoped, tag = 'output window, operand 0, single buffered']
    #allocation3 [shape = 's32[1]{0}', space=sflag, size = 0x4, scoped, tag = 'scoped memory for tpu_custom_call.1']
    %7 = vsyncpa [#allocation3], 0
    // Predicated region
    $region2: #{tpu_custom_call.1} parent=1 // pred_check
      _
    $region3: #{tpu_custom_call.1} parent=1 // pred_check_branch
      %9 = sbr.rel (0) target = $region5
    $region4: #{tpu_custom_call.1} parent=1 // pred_region
      _
    $region5: #{tpu_custom_call.1} parent=1 // pred_fallthru
      _
    // Predicated region
    $region6: #{tpu_custom_call.1} parent=1 // pred_check
      _
    $region7: #{tpu_custom_call.1} parent=1 // pred_check_branch
      %11 = sbr.rel (0) target = $region9
    $region8: #{tpu_custom_call.1} parent=1 // pred_region
      _
    $region9: #{tpu_custom_call.1} parent=1 // pred_fallthru
      _
    %v12 = vld [vmem:[%s0] sm:$0xff]
    %v13 = vld [vmem:[%s0 + $0x8] sm:$0xff]
    %v14 = vld [vmem:[%s0 + $0x10] sm:$0xff]
    %v15 = vld [vmem:[%s0 + $0x18] sm:$0xff]
    %v16 = vld [vmem:[%s0 + $0x20] sm:$0xff]
    %v17 = vld [vmem:[%s0 + $0x28] sm:$0xff]
    %v18 = vld [vmem:[%s0 + $0x30] sm:$0xff]
    %v19 = vld [vmem:[%s0 + $0x38] sm:$0xff]
    %20 = vmax.xlane.f32.xlu0 %v12
    %v21 = vpop.xlane.xlu0 %20
    %22 = vmax.xlane.f32.xlu0 %v13
    %v23 = vpop.xlane.xlu0 %22
    %24 = vmax.xlane.f32.xlu0 %v14
    %v25 = vpop.xlane.xlu0 %24
    %26 = vmax.xlane.f32.xlu0 %v15
    %v27 = vpop.xlane.xlu0 %26
    %28 = vmax.xlane.f32.xlu0 %v16
    %v29 = vpop.xlane.xlu0 %28
    %30 = vmax.xlane.f32.xlu0 %v17
    %v31 = vpop.xlane.xlu0 %30
    %32 = vmax.xlane.f32.xlu0 %v18
    %v33 = vpop.xlane.xlu0 %32
    %34 = vmax.xlane.f32.xlu0 %v19
    %v35 = vpop.xlane.xlu0 %34
    %v36 = vsub.f32 %v12, %v21
    %v37 = vsub.f32 %v13, %v23
    %v38 = vsub.f32 %v14, %v25
    %v39 = vsub.f32 %v15, %v27
    %v40 = vsub.f32 %v16, %v29
    %v41 = vsub.f32 %v17, %v31
    %v42 = vsub.f32 %v18, %v33
    %v43 = vsub.f32 %v19, %v35
    %v44 = vmul.f32 %v36, 1.442695
    %v45 = vpow.pop %v44
    %v46 = vmul.f32 %v37, 1.442695
    %v47 = vpow.pop %v46
    %v48 = vmul.f32 %v38, 1.442695
    %v49 = vpow.pop %v48
    %v50 = vmul.f32 %v39, 1.442695
    %v51 = vpow.pop %v50
    %v52 = vmul.f32 %v40, 1.442695
    %v53 = vpow.pop %v52
    %v54 = vmul.f32 %v41, 1.442695
    %v55 = vpow.pop %v54
    %v56 = vmul.f32 %v42, 1.442695
    %v57 = vpow.pop %v56
    %v58 = vmul.f32 %v43, 1.442695
    %v59 = vpow.pop %v58
    %60 = vadd.xlane.f32.xlu0 %v45
    %v61 = vpop.xlane.xlu0 %60
    %62 = vadd.xlane.f32.xlu0 %v47
    %v63 = vpop.xlane.xlu0 %62
    %64 = vadd.xlane.f32.xlu0 %v49
    %v65 = vpop.xlane.xlu0 %64
    %66 = vadd.xlane.f32.xlu0 %v51
    %v67 = vpop.xlane.xlu0 %66
    %68 = vadd.xlane.f32.xlu0 %v53
    %v69 = vpop.xlane.xlu0 %68
    %70 = vadd.xlane.f32.xlu0 %v55
    %v71 = vpop.xlane.xlu0 %70
    %72 = vadd.xlane.f32.xlu0 %v57
    %v73 = vpop.xlane.xlu0 %72
    %74 = vadd.xlane.f32.xlu0 %v59
    %v75 = vpop.xlane.xlu0 %74
    %v76 = vlaneseq
    %v77 = vand.u32 %v76, 127
    %v78 = vld [vmem:[%s1] sm:$0xff]
    %v79 = vld [vmem:[%s1 + $0x8] sm:$0xff]
    %v80 = vld [vmem:[%s1 + $0x10] sm:$0xff]
    %v81 = vld [vmem:[%s1 + $0x18] sm:$0xff]
    %v82 = vld [vmem:[%s1 + $0x20] sm:$0xff]
    %v83 = vld [vmem:[%s1 + $0x28] sm:$0xff]
    %v84 = vld [vmem:[%s1 + $0x30] sm:$0xff]
    %v85 = vld [vmem:[%s1 + $0x38] sm:$0xff]
    %86 = vset.pattern.permute.xlu0 0
    %87 = vperm.xlu0 %86, %v78
    %v88 = vpop.permute.xlu0 %87
    %89 = vset.pattern.permute.xlu0 0
    %90 = vperm.xlu0 %89, %v79
    %v91 = vpop.permute.xlu0 %90
    %92 = vset.pattern.permute.xlu0 0
    %93 = vperm.xlu0 %92, %v80
    %v94 = vpop.permute.xlu0 %93
    %95 = vset.pattern.permute.xlu0 0
    %96 = vperm.xlu0 %95, %v81
    %v97 = vpop.permute.xlu0 %96
    %98 = vset.pattern.permute.xlu0 0
    %99 = vperm.xlu0 %98, %v82
    %v100 = vpop.permute.xlu0 %99
    %101 = vset.pattern.permute.xlu0 0
    %102 = vperm.xlu0 %101, %v83
    %v103 = vpop.permute.xlu0 %102
    %104 = vset.pattern.permute.xlu0 0
    %105 = vperm.xlu0 %104, %v84
    %v106 = vpop.permute.xlu0 %105
    %107 = vset.pattern.permute.xlu0 0
    %108 = vperm.xlu0 %107, %v85
    %v109 = vpop.permute.xlu0 %108
    %vm110 = vcmp.eq.s32.totalorder %v77, %v88
    %vm111 = vcmp.eq.s32.totalorder %v77, %v91
    %vm112 = vcmp.eq.s32.totalorder %v77, %v94
    %vm113 = vcmp.eq.s32.totalorder %v77, %v97
    %vm114 = vcmp.eq.s32.totalorder %v77, %v100
    %vm115 = vcmp.eq.s32.totalorder %v77, %v103
    %vm116 = vcmp.eq.s32.totalorder %v77, %v106
    %vm117 = vcmp.eq.s32.totalorder %v77, %v109
    %v118 = vsel %vm110, %v45, 0.0
    %v119 = vsel %vm111, %v47, 0.0
    %v120 = vsel %vm112, %v49, 0.0
    %v121 = vsel %vm113, %v51, 0.0
    %v122 = vsel %vm114, %v53, 0.0
    %v123 = vsel %vm115, %v55, 0.0
    %v124 = vsel %vm116, %v57, 0.0
    %v125 = vsel %vm117, %v59, 0.0
    %126 = vadd.xlane.f32.xlu0 %v118
    %v127 = vpop.xlane.xlu0 %126
    %128 = vadd.xlane.f32.xlu0 %v119
    %v129 = vpop.xlane.xlu0 %128
    %130 = vadd.xlane.f32.xlu0 %v120
    %v131 = vpop.xlane.xlu0 %130
    %132 = vadd.xlane.f32.xlu0 %v121
    %v133 = vpop.xlane.xlu0 %132
    %134 = vadd.xlane.f32.xlu0 %v122
    %v135 = vpop.xlane.xlu0 %134
    %136 = vadd.xlane.f32.xlu0 %v123
    %v137 = vpop.xlane.xlu0 %136
    %138 = vadd.xlane.f32.xlu0 %v124
    %v139 = vpop.xlane.xlu0 %138
    %140 = vadd.xlane.f32.xlu0 %v125
    %v141 = vpop.xlane.xlu0 %140
    %v142 = vrcp.pop %v61
    %v143 = vrcp.pop %v63
    %v144 = vrcp.pop %v65
    %v145 = vrcp.pop %v67
    %v146 = vrcp.pop %v69
    %v147 = vrcp.pop %v71
    %v148 = vrcp.pop %v73
    %v149 = vrcp.pop %v75
    %v150 = vmul.f32 %v127, %v142
    %v151 = vmul.f32 %v129, %v143
    %v152 = vmul.f32 %v131, %v144
    %v153 = vmul.f32 %v133, %v145
    %v154 = vmul.f32 %v135, %v146
    %v155 = vmul.f32 %v137, %v147
    %v156 = vmul.f32 %v139, %v148
    %v157 = vmul.f32 %v141, %v149
    %v158 = vsub.f32 1.0, %v150
    %v159 = vsub.f32 1.0, %v151
    %v160 = vsub.f32 1.0, %v152
    %v161 = vsub.f32 1.0, %v153
    %v162 = vsub.f32 1.0, %v154
    %v163 = vsub.f32 1.0, %v155
    %v164 = vsub.f32 1.0, %v156
    %v165 = vsub.f32 1.0, %v157
    %v166 = vmul.f32 %v158, %v150
    %v167 = vmul.f32 %v159, %v151
    %v168 = vmul.f32 %v160, %v152
    %v169 = vmul.f32 %v161, %v153
    %v170 = vmul.f32 %v162, %v154
    %v171 = vmul.f32 %v163, %v155
    %v172 = vmul.f32 %v164, %v156
    %v173 = vmul.f32 %v165, %v157
    %v174 = vmul.f32 %v166, 2.0
    %v175 = vmul.f32 %v167, 2.0
    %v176 = vmul.f32 %v168, 2.0
    %v177 = vmul.f32 %v169, 2.0
    %v178 = vmul.f32 %v170, 2.0
    %v179 = vmul.f32 %v171, 2.0
    %v180 = vmul.f32 %v172, 2.0
    %v181 = vmul.f32 %v173, 2.0
    %v182 = vadd.f32 %v174, 1.0
    %v183 = vadd.f32 %v175, 1.0
    %v184 = vadd.f32 %v176, 1.0
    %v185 = vadd.f32 %v177, 1.0
    %v186 = vadd.f32 %v178, 1.0
    %v187 = vadd.f32 %v179, 1.0
    %v188 = vadd.f32 %v180, 1.0
    %v189 = vadd.f32 %v181, 1.0
    %v190 = vadd.f32 %v166, 2.0
    %v191 = vadd.f32 %v167, 2.0
    %v192 = vadd.f32 %v168, 2.0
    %v193 = vadd.f32 %v169, 2.0
    %v194 = vadd.f32 %v170, 2.0
    %v195 = vadd.f32 %v171, 2.0
    %v196 = vadd.f32 %v172, 2.0
    %v197 = vadd.f32 %v173, 2.0
    %v198 = vrcp.pop %v190
    %v199 = vmul.f32 %v182, %v198
    %v200 = vrcp.pop %v191
    %v201 = vmul.f32 %v183, %v200
    %v202 = vrcp.pop %v192
    %v203 = vmul.f32 %v184, %v202
    %v204 = vrcp.pop %v193
    %v205 = vmul.f32 %v185, %v204
    %v206 = vrcp.pop %v194
    %v207 = vmul.f32 %v186, %v206
    %v208 = vrcp.pop %v195
    %v209 = vmul.f32 %v187, %v208
    %v210 = vrcp.pop %v196
    %v211 = vmul.f32 %v188, %v210
    %v212 = vrcp.pop %v197
    %v213 = vmul.f32 %v189, %v212
    %v214 = vsub.f32 1.0, %v199
    %v215 = vsub.f32 1.0, %v201
    %v216 = vsub.f32 1.0, %v203
    %v217 = vsub.f32 1.0, %v205
    %v218 = vsub.f32 1.0, %v207
    %v219 = vsub.f32 1.0, %v209
    %v220 = vsub.f32 1.0, %v211
    %v221 = vsub.f32 1.0, %v213
    %p222 = scmp.eq.s32.totalorder 0, 0
    // Predicated region
    $region10: #{tpu_custom_call.1} parent=1 // pred_check
      %p223 = pneg %p222
    $region11: #{tpu_custom_call.1} parent=1 // pred_check_branch
      %225 = sbr.rel (%p223) target = $region13
    $region12: #{tpu_custom_call.1} parent=1 // pred_region
      %vm226 = vcmask 0
      %227 = vst.msk [vmem:[#allocation2] sm:$0x1] %vm226, 0.0
    $region13: #{tpu_custom_call.1} parent=1 // pred_fallthru
      _
    %v228 = vld [vmem:[#allocation2] sm:$0x1]
    %v229 = vadd.f32 %v214, %v215
    %v230 = vadd.f32 %v229, %v216
    %v231 = vadd.f32 %v230, %v217
    %v232 = vadd.f32 %v231, %v218
    %v233 = vadd.f32 %v232, %v219
    %v234 = vadd.f32 %v233, %v220
    %v235 = vadd.f32 %v234, %v221
    %v236 = vrot.slane %v235, 4
    %v237 = vadd.f32 %v235, %v236
    %v238 = vrot.slane %v237, 2
    %v239 = vadd.f32 %v237, %v238
    %v240 = vrot.slane %v239, 1
    %v241 = vadd.f32 %v239, %v240
    %v242 = vadd.f32 %v228, %v241
    %vm243 = vcmask 0
    %244 = vst.msk [vmem:[#allocation2] sm:$0x1] %vm243, %v242
    // Predicated region
    $region14: #{tpu_custom_call.1} parent=1 // pred_check
      _
    $region15: #{tpu_custom_call.1} parent=1 // pred_check_branch
      %246 = sbr.rel (0) target = $region17
    $region16: #{tpu_custom_call.1} parent=1 // pred_region
      %s248 = ssub.s32 16, 16
      %249 = vsyncadd [#allocation3], %s248
      %s251 = sshll.u32 [#allocation2], 4
      %s252 = int_to_ptr.vmem [resolvable:$true] %s251
      %254 = dma.vmem_to_hbm [thread:$0]  %s252, 16, %s2, [#allocation3]
    $region17: #{tpu_custom_call.1} parent=1 // pred_fallthru
      _
    // Predicated region
    $region18: #{tpu_custom_call.1} parent=1 // pred_check
      _
    $region19: #{tpu_custom_call.1} parent=1 // pred_check_branch
      %256 = sbr.rel (0) target = $region21
    $region20: #{tpu_custom_call.1} parent=1 // pred_region
      %257 = dma.done [#allocation3], 16
    $region21: #{tpu_custom_call.1} parent=1 // pred_fallthru
      _
    %258 = vsyncpa [#allocation3], 1

</llo_original>
